<compile_context>
chip_gen: v6e
topology: v6e:2x2x1
jax: 0.10.0
libtpu: 0.0.40
codegen_flags: <defaults>
</compile_context>

<pallas_src>
import functools

import jax
import jax.numpy as jnp
from jax.experimental import pallas as pl
from jax.experimental.pallas import tpu as pltpu

LANE = 128          # TPU lane width: all feature dims padded to this
NUM_SEGS = 3        # packed weight slab = [ W1 | W2 | W_head ], each (LANE, LANE)


def qnetwork_kernel(x_ref, w_ref, b_ref, q_ref, *, action_size):
    x = x_ref[...]                                   # (bm, LANE) zero-padded states

    # static, 128-lane-aligned slices of the packed parameter slabs
    w1 = w_ref[:, 0 * LANE:1 * LANE]                 # (LANE, LANE)
    w2 = w_ref[:, 1 * LANE:2 * LANE]
    wh = w_ref[:, 2 * LANE:3 * LANE]                 # fused [advantage | value] head
    b1 = b_ref[:, 0 * LANE:1 * LANE]                 # (1, LANE)
    b2 = b_ref[:, 1 * LANE:2 * LANE]
    bh = b_ref[:, 2 * LANE:3 * LANE]

    # features = relu(dense1(state)); relu(dense2(features))
    h1 = jnp.maximum(jnp.dot(x, w1, preferred_element_type=jnp.float32) + b1, 0.0)
    h2 = jnp.maximum(jnp.dot(h1, w2, preferred_element_type=jnp.float32) + b2, 0.0)

    # fused heads: head[:, :A] = advantages, head[:, A] = value, head[:, A+1:] = 0
    head = jnp.dot(h2, wh, preferred_element_type=jnp.float32) + bh   # (bm, LANE)

    lane = jax.lax.broadcasted_iota(jnp.int32, head.shape, 1)
    adv_mask = (lane < action_size).astype(jnp.float32)
    val_mask = (lane == action_size).astype(jnp.float32)

    # masked cross-lane reduces (XLU); multiply by precomputed 1/A, no divide
    adv_mean = jnp.sum(head * adv_mask, axis=1, keepdims=True) * (1.0 / action_size)
    value = jnp.sum(head * val_mask, axis=1, keepdims=True)

    # q = value + (advantages - advantages.mean(1, keepdims=True))
    # lanes >= A hold junk and are sliced off in the wrapper (keeps store lane-dense)
    q_ref[...] = (head + (value - adv_mean)).astype(q_ref.dtype)


def pack_params(params, state_size, action_size):
    """Pack all weights/biases into one (128, 384) slab + one (1, 384) bias bank."""
    hidden = 5 * state_size
    assert state_size <= LANE and hidden <= LANE and action_size + 1 <= LANE

    w_slab = jnp.zeros((LANE, NUM_SEGS * LANE), jnp.float32)
    b_slab = jnp.zeros((1, NUM_SEGS * LANE), jnp.float32)

    w_slab = w_slab.at[:state_size, 0:hidden].set(params["w1"])
    w_slab = w_slab.at[:hidden, LANE:LANE + hidden].set(params["w2"])
    w_slab = w_slab.at[:hidden, 2 * LANE:2 * LANE + action_size].set(params["wa"])
    w_slab = w_slab.at[:hidden,
                       2 * LANE + action_size:2 * LANE + action_size + 1].set(params["wv"])

    b_slab = b_slab.at[:, 0:hidden].set(params["b1"])
    b_slab = b_slab.at[:, LANE:LANE + hidden].set(params["b2"])
    b_slab = b_slab.at[:, 2 * LANE:2 * LANE + action_size].set(params["ba"])
    b_slab = b_slab.at[:,
                       2 * LANE + action_size:2 * LANE + action_size + 1].set(params["bv"])
    return w_slab, b_slab


def qnetwork_forward(x, params, state_size, action_size, *, bm=128):
    """x: (B, state_size) float32. Returns (B, action_size) Q-values."""
    B, S = x.shape
    assert S == state_size

    w_slab, b_slab = pack_params(params, state_size, action_size)

    # Pad batch to a multiple of bm and features to LANE. Zero padding is exact:
    # padded weight rows/cols are zero, so padded input columns contribute nothing.
    num_blocks = pl.cdiv(B, bm)
    b_pad = num_blocks * bm
    x_pad = jnp.zeros((b_pad, LANE), jnp.float32).at[:B, :S].set(x)

    out = pl.pallas_call(
        functools.partial(qnetwork_kernel, action_size=action_size),
        out_shape=jax.ShapeDtypeStruct((b_pad, LANE), jnp.float32),
        grid=(num_blocks,),
        in_specs=[
            pl.BlockSpec((bm, LANE), lambda i: (i, 0)),               # states, batch-tiled
            pl.BlockSpec((LANE, NUM_SEGS * LANE), lambda i: (0, 0)),  # packed weights, resident
            pl.BlockSpec((1, NUM_SEGS * LANE), lambda i: (0, 0)),     # packed biases, resident
        ],
        out_specs=pl.BlockSpec((bm, LANE), lambda i: (i, 0)),
        compiler_params=pltpu.CompilerParams(
            dimension_semantics=("parallel",)),                       # 2x on v7x megacore
    )(x_pad, w_slab, b_slab)

    return out[:B, :action_size]


def init_params(key, state_size, action_size):
    """Deterministic init mimicking nn.Linear default (uniform +-1/sqrt(fan_in))."""
    hidden = 5 * state_size

    def linear(key, fan_in, fan_out):
        kw, kb = jax.random.split(key)
        bound = 1.0 / jnp.sqrt(jnp.float32(fan_in))
        w = jax.random.uniform(kw, (fan_in, fan_out), jnp.float32, -bound, bound)
        b = jax.random.uniform(kb, (1, fan_out), jnp.float32, -bound, bound)
        return w, b

    k1, k2, k3, k4 = jax.random.split(key, 4)
    w1, b1 = linear(k1, state_size, hidden)
    w2, b2 = linear(k2, hidden, hidden)
    wa, ba = linear(k3, hidden, action_size)
    wv, bv = linear(k4, hidden, 1)
    return {"w1": w1, "b1": b1, "w2": w2, "b2": b2,
            "wa": wa, "ba": ba, "wv": wv, "bv": bv}


def qnetwork_reference(x, p):
    """Pure-JAX reference of the PyTorch forward."""
    h1 = jax.nn.relu(x @ p["w1"] + p["b1"])
    h2 = jax.nn.relu(h1 @ p["w2"] + p["b2"])
    adv = h2 @ p["wa"] + p["ba"]
    val = h2 @ p["wv"] + p["bv"]
    return val + (adv - adv.mean(axis=1, keepdims=True))


if __name__ == "__main__":
    STATE_SIZE = 8      # state_size
    ACTION_SIZE = 4     # action_size
    BATCH = 2

    key = jax.random.PRNGKey(0)
    k_params, k_x = jax.random.split(key)

    params = init_params(k_params, STATE_SIZE, ACTION_SIZE)
    x = jax.random.normal(k_x, (BATCH, STATE_SIZE), dtype=jnp.float32)

    q = qnetwork_forward(x, params, STATE_SIZE, ACTION_SIZE)
    q = jax.block_until_ready(q)

    q_ref = qnetwork_reference(x, params)
    assert q.shape == (BATCH, ACTION_SIZE)
    assert jnp.allclose(q, q_ref, atol=1e-5, rtol=1e-5), (q, q_ref)

    print("KERNEL_OK")
</pallas_src>

<mosaic_0001>
module attributes {stable_mosaic.version = 11 : i64} {
  func.func @qnetwork_kernel(%arg0: i32, %arg1: memref<128x128xf32, #tpu.memory_space<vmem>>, %arg2: memref<128x384xf32, #tpu.memory_space<vmem>>, %arg3: memref<1x384xf32, #tpu.memory_space<vmem>>, %arg4: memref<128x128xf32, #tpu.memory_space<vmem>>) attributes {dimension_semantics = [#tpu.dimension_semantics<parallel>], iteration_bounds = array<i64: 1>, scalar_prefetch = 0 : i64, scratch_operands = 0 : i64, tpu.core_type = #tpu.core_type<tc>, window_params = [{transform_indices = @transform_0, window_bounds = array<i64: 128, 128>}, {pipeline_mode = #tpu.pipeline_mode<synchronous>, transform_indices = @transform_1, window_bounds = array<i64: 128, 384>}, {pipeline_mode = #tpu.pipeline_mode<synchronous>, transform_indices = @transform_2, window_bounds = array<i64: 1, 384>}, {transform_indices = @transform_3, window_bounds = array<i64: 128, 128>}]} {
    %c0 = arith.constant 0 : index
    %c0_0 = arith.constant 0 : index
    %0 = vector.load %arg1[%c0, %c0_0] : memref<128x128xf32, #tpu.memory_space<vmem>>, vector<128x128xf32>
    %c0_1 = arith.constant 0 : index
    %c0_2 = arith.constant 0 : index
    %1 = vector.load %arg2[%c0_1, %c0_2] : memref<128x384xf32, #tpu.memory_space<vmem>>, vector<128x128xf32>
    %c0_3 = arith.constant 0 : index
    %c128 = arith.constant 128 : index
    %2 = vector.load %arg2[%c0_3, %c128] : memref<128x384xf32, #tpu.memory_space<vmem>>, vector<128x128xf32>
    %c0_4 = arith.constant 0 : index
    %c256 = arith.constant 256 : index
    %3 = vector.load %arg2[%c0_4, %c256] : memref<128x384xf32, #tpu.memory_space<vmem>>, vector<128x128xf32>
    %c0_5 = arith.constant 0 : index
    %c0_6 = arith.constant 0 : index
    %4 = vector.load %arg3[%c0_5, %c0_6] : memref<1x384xf32, #tpu.memory_space<vmem>>, vector<1x128xf32>
    %c0_7 = arith.constant 0 : index
    %c128_8 = arith.constant 128 : index
    %5 = vector.load %arg3[%c0_7, %c128_8] : memref<1x384xf32, #tpu.memory_space<vmem>>, vector<1x128xf32>
    %c0_9 = arith.constant 0 : index
    %c256_10 = arith.constant 256 : index
    %6 = vector.load %arg3[%c0_9, %c256_10] : memref<1x384xf32, #tpu.memory_space<vmem>>, vector<1x128xf32>
    %cst = arith.constant dense<0.000000e+00> : vector<128x128xf32>
    %7 = tpu.matmul %0, %1, %cst {dimension_numbers = #tpu.dot_dimension_numbers<[1], [0], [0], [1], [0, 0, 1, 1], [], []>} : vector<128x128xf32>, vector<128x128xf32>, vector<128x128xf32> -> vector<128x128xf32>
    %8 = vector.broadcast %4 : vector<1x128xf32> to vector<128x128xf32>
    %9 = arith.addf %7, %8 : vector<128x128xf32>
    %cst_11 = arith.constant 0.000000e+00 : f32
    %10 = vector.broadcast %cst_11 : f32 to vector<128x128xf32>
    %11 = arith.maximumf %9, %10 : vector<128x128xf32>
    %cst_12 = arith.constant dense<0.000000e+00> : vector<128x128xf32>
    %12 = tpu.matmul %11, %2, %cst_12 {dimension_numbers = #tpu.dot_dimension_numbers<[1], [0], [0], [1], [0, 0, 1, 1], [], []>} : vector<128x128xf32>, vector<128x128xf32>, vector<128x128xf32> -> vector<128x128xf32>
    %13 = vector.broadcast %5 : vector<1x128xf32> to vector<128x128xf32>
    %14 = arith.addf %12, %13 : vector<128x128xf32>
    %cst_13 = arith.constant 0.000000e+00 : f32
    %15 = vector.broadcast %cst_13 : f32 to vector<128x128xf32>
    %16 = arith.maximumf %14, %15 : vector<128x128xf32>
    %cst_14 = arith.constant dense<0.000000e+00> : vector<128x128xf32>
    %17 = tpu.matmul %16, %3, %cst_14 {dimension_numbers = #tpu.dot_dimension_numbers<[1], [0], [0], [1], [0, 0, 1, 1], [], []>} : vector<128x128xf32>, vector<128x128xf32>, vector<128x128xf32> -> vector<128x128xf32>
    %18 = vector.broadcast %6 : vector<1x128xf32> to vector<128x128xf32>
    %19 = arith.addf %17, %18 : vector<128x128xf32>
    %20 = tpu.iota {dimensions = array<i32: 1>} : vector<128x128xi32>
    %c4_i32 = arith.constant 4 : i32
    %21 = vector.broadcast %c4_i32 : i32 to vector<128x128xi32>
    %22 = arith.cmpi slt, %20, %21 : vector<128x128xi32>
    %23 = arith.extui %22 : vector<128x128xi1> to vector<128x128xi32>
    %24 = arith.sitofp %23 : vector<128x128xi32> to vector<128x128xf32>
    %c4_i32_15 = arith.constant 4 : i32
    %25 = vector.broadcast %c4_i32_15 : i32 to vector<128x128xi32>
    %26 = arith.cmpi eq, %20, %25 : vector<128x128xi32>
    %27 = arith.extui %26 : vector<128x128xi1> to vector<128x128xi32>
    %28 = arith.sitofp %27 : vector<128x128xi32> to vector<128x128xf32>
    %29 = arith.mulf %19, %24 : vector<128x128xf32>
    %cst_16 = arith.constant dense<0.000000e+00> : vector<128xf32>
    %30 = vector.multi_reduction <add>, %29, %cst_16 [1] : vector<128x128xf32> to vector<128xf32>
    %31 = vector.shape_cast %30 : vector<128xf32> to vector<128x1xf32>
    %cst_17 = arith.constant 2.500000e-01 : f32
    %32 = vector.broadcast %cst_17 : f32 to vector<128x1xf32>
    %33 = arith.mulf %31, %32 : vector<128x1xf32>
    %34 = arith.mulf %19, %28 : vector<128x128xf32>
    %cst_18 = arith.constant dense<0.000000e+00> : vector<128xf32>
    %35 = vector.multi_reduction <add>, %34, %cst_18 [1] : vector<128x128xf32> to vector<128xf32>
    %36 = vector.shape_cast %35 : vector<128xf32> to vector<128x1xf32>
    %37 = arith.subf %36, %33 : vector<128x1xf32>
    %38 = vector.broadcast %37 : vector<128x1xf32> to vector<128x128xf32>
    %39 = arith.addf %19, %38 : vector<128x128xf32>
    %c0_19 = arith.constant 0 : index
    %c0_20 = arith.constant 0 : index
    %40 = vector.load %arg4[%c0_19, %c0_20] : memref<128x128xf32, #tpu.memory_space<vmem>>, vector<128x128xf32>
    tpu.vector_store %arg4[%c0_19, %c0_20], %39 {strides = array<i32>} : memref<128x128xf32, #tpu.memory_space<vmem>>, vector<128x128xf32>,
    return
  }
  func.func @transform_0(%arg0: i32) -> (i32, i32) {
    %c0_i32 = arith.constant 0 : i32
    %c0_i32_0 = arith.constant 0 : i32
    return %arg0, %c0_i32 : i32, i32
  }
  func.func @transform_1(%arg0: i32) -> (i32, i32) {
    %c0_i32 = arith.constant 0 : i32
    %c0_i32_0 = arith.constant 0 : i32
    %c0_i32_1 = arith.constant 0 : i32
    return %c0_i32, %c0_i32_0 : i32, i32
  }
  func.func @transform_2(%arg0: i32) -> (i32, i32) {
    %c0_i32 = arith.constant 0 : i32
    %c0_i32_0 = arith.constant 0 : i32
    %c0_i32_1 = arith.constant 0 : i32
    return %c0_i32, %c0_i32_0 : i32, i32
  }
  func.func @transform_3(%arg0: i32) -> (i32, i32) {
    %c0_i32 = arith.constant 0 : i32
    %c0_i32_0 = arith.constant 0 : i32
    return %arg0, %c0_i32 : i32, i32
  }
}

</mosaic_0001>

<llo_original>
// kernel: tpu_custom_call.1
$region0: #{tpu_custom_call.1}
  #allocation0 [shape = 'u32[]', space=smem, size = 0x4, offset = 0x4, fixed_abs, tag = 'smem constant byte address 0x4 - core index']
  #allocation1 [shape = 'u32[144,128]{1,0:T(1,128)}', space=vmem, size = 0x12000, scoped, tag = 'internal scratch']
  %s0 = inlined_call_operand.hbm [shape: f32[128,128], index: 0, kind: input, shape index: {}]
  %s1 = inlined_call_operand.hbm [shape: f32[128,384], index: 1, kind: input, shape index: {}]
  %s2 = inlined_call_operand.vmem [shape: f32[1,384], index: 2, kind: input, shape index: {}]
  %s3 = inlined_call_operand.hbm [shape: f32[128,128], index: 3, kind: output, shape index: {}]
  %s4 = sld [smem:[#allocation0]]
  $region30: #{tpu_custom_call.1} parent=0
    _
  %s6 = ssub.s32 1, %s4
  %s7 = scalar_select 0, %s6, %s4
  $region1: #{tpu_custom_call.1} parent=0
    #allocation2 [shape = 'u8[65536]{0}', space=vmem, size = 0x10000, scoped, tag = 'input window, operand 0, single buffered']
    #allocation3 [shape = 's32[1]{0}', space=sflag, size = 0x4, scoped, tag = 'scoped memory for tpu_custom_call.1']
    #allocation4 [shape = 's32[1]{0}', space=sflag, size = 0x4, scoped, tag = 'scoped memory for tpu_custom_call.1']
    #allocation5 [shape = 'u8[196608]{0}', space=vmem, size = 0x30000, scoped, tag = 'input window, operand 1, single buffered']
    #allocation6 [shape = 's32[1]{0}', space=sflag, size = 0x4, scoped, tag = 'scoped memory for tpu_custom_call.1']
    #allocation7 [shape = 'u8[65536]{0}', space=vmem, size = 0x10000, scoped, tag = 'output window, operand 0, single buffered']
    %8 = vsyncpa [#allocation3], 0
    %9 = vsyncpa [#allocation6], 0
    %10 = vsyncpa [#allocation4], 0
    // Predicated region
    $region2: #{tpu_custom_call.1} parent=1 // pred_check
      _
    $region3: #{tpu_custom_call.1} parent=1 // pred_check_branch
      %12 = sbr.rel (0) target = $region5
    $region4: #{tpu_custom_call.1} parent=1 // pred_region
      %s14 = ssub.s32 2048, 2048
      %15 = vsyncadd [#allocation3], %s14
      %s16 = sshll.u32 [#allocation2], 4
      %s17 = int_to_ptr.vmem [resolvable:$true] %s16
      %22 = dma.hbm_to_vmem [thread:$0]  %s0, 2048, %s17, [#allocation3], 128, 128, 8
    $region5: #{tpu_custom_call.1} parent=1 // pred_fallthru
      _
    // Predicated region
    $region6: #{tpu_custom_call.1} parent=1 // pred_check
      _
    $region7: #{tpu_custom_call.1} parent=1 // pred_check_branch
      %24 = sbr.rel (0) target = $region9
    $region8: #{tpu_custom_call.1} parent=1 // pred_region
      %s26 = ssub.s32 6144, 6144
      %27 = vsyncadd [#allocation6], %s26
      %s28 = sshll.u32 [#allocation5], 4
      %s29 = int_to_ptr.vmem [resolvable:$true] %s28
      %34 = dma.hbm_to_vmem [thread:$0]  %s1, 6144, %s29, [#allocation6], 384, 384, 24
    $region9: #{tpu_custom_call.1} parent=1 // pred_fallthru
      _
    // Predicated region
    $region10: #{tpu_custom_call.1} parent=1 // pred_check
      _
    $region11: #{tpu_custom_call.1} parent=1 // pred_check_branch
      %36 = sbr.rel (0) target = $region13
    $region12: #{tpu_custom_call.1} parent=1 // pred_region
      _
    $region13: #{tpu_custom_call.1} parent=1 // pred_fallthru
      _
    // Predicated region
    $region14: #{tpu_custom_call.1} parent=1 // pred_check
      _
    $region15: #{tpu_custom_call.1} parent=1 // pred_check_branch
      %38 = sbr.rel (0) target = $region17
    $region16: #{tpu_custom_call.1} parent=1 // pred_region
      %39 = dma.done [#allocation3], 2048
    $region17: #{tpu_custom_call.1} parent=1 // pred_fallthru
      _
    // Predicated region
    $region18: #{tpu_custom_call.1} parent=1 // pred_check
      _
    $region19: #{tpu_custom_call.1} parent=1 // pred_check_branch
      %41 = sbr.rel (0) target = $region21
    $region20: #{tpu_custom_call.1} parent=1 // pred_region
      %42 = dma.done [#allocation6], 6144
    $region21: #{tpu_custom_call.1} parent=1 // pred_fallthru
      _
    %v43 = vld [vmem:[#allocation2] sm:$0xff]
    %v44 = vld [vmem:[#allocation2 + $0x8] sm:$0xff]
    %v45 = vld [vmem:[#allocation2 + $0x10] sm:$0xff]
    %v46 = vld [vmem:[#allocation2 + $0x18] sm:$0xff]
    %v47 = vld [vmem:[#allocation2 + $0x20] sm:$0xff]
    %v48 = vld [vmem:[#allocation2 + $0x28] sm:$0xff]
    %v49 = vld [vmem:[#allocation2 + $0x30] sm:$0xff]
    %v50 = vld [vmem:[#allocation2 + $0x38] sm:$0xff]
    %v51 = vld [vmem:[#allocation2 + $0x40] sm:$0xff]
    %v52 = vld [vmem:[#allocation2 + $0x48] sm:$0xff]
    %v53 = vld [vmem:[#allocation2 + $0x50] sm:$0xff]
    %v54 = vld [vmem:[#allocation2 + $0x58] sm:$0xff]
    %v55 = vld [vmem:[#allocation2 + $0x60] sm:$0xff]
    %v56 = vld [vmem:[#allocation2 + $0x68] sm:$0xff]
    %v57 = vld [vmem:[#allocation2 + $0x70] sm:$0xff]
    %v58 = vld [vmem:[#allocation2 + $0x78] sm:$0xff]
    %v59 = vld [vmem:[#allocation5] sm:$0xff]
    %v60 = vld [vmem:[#allocation5 + $0x18] sm:$0xff]
    %v61 = vld [vmem:[#allocation5 + $0x30] sm:$0xff]
    %v62 = vld [vmem:[#allocation5 + $0x48] sm:$0xff]
    %v63 = vld [vmem:[#allocation5 + $0x60] sm:$0xff]
    %v64 = vld [vmem:[#allocation5 + $0x78] sm:$0xff]
    %v65 = vld [vmem:[#allocation5 + $0x90] sm:$0xff]
    %v66 = vld [vmem:[#allocation5 + $0xa8] sm:$0xff]
    %v67 = vld [vmem:[#allocation5 + $0xc0] sm:$0xff]
    %v68 = vld [vmem:[#allocation5 + $0xd8] sm:$0xff]
    %v69 = vld [vmem:[#allocation5 + $0xf0] sm:$0xff]
    %v70 = vld [vmem:[#allocation5 + $0x108] sm:$0xff]
    %v71 = vld [vmem:[#allocation5 + $0x120] sm:$0xff]
    %v72 = vld [vmem:[#allocation5 + $0x138] sm:$0xff]
    %v73 = vld [vmem:[#allocation5 + $0x150] sm:$0xff]
    %v74 = vld [vmem:[#allocation5 + $0x168] sm:$0xff]
    %v75 = vld [vmem:[#allocation5 + $0x8] sm:$0xff]
    %v76 = vld [vmem:[#allocation5 + $0x20] sm:$0xff]
    %v77 = vld [vmem:[#allocation5 + $0x38] sm:$0xff]
    %v78 = vld [vmem:[#allocation5 + $0x50] sm:$0xff]
    %v79 = vld [vmem:[#allocation5 + $0x68] sm:$0xff]
    %v80 = vld [vmem:[#allocation5 + $0x80] sm:$0xff]
    %v81 = vld [vmem:[#allocation5 + $0x98] sm:$0xff]
    %v82 = vld [vmem:[#allocation5 + $0xb0] sm:$0xff]
    %v83 = vld [vmem:[#allocation5 + $0xc8] sm:$0xff]
    %v84 = vld [vmem:[#allocation5 + $0xe0] sm:$0xff]
    %v85 = vld [vmem:[#allocation5 + $0xf8] sm:$0xff]
    %v86 = vld [vmem:[#allocation5 + $0x110] sm:$0xff]
    %v87 = vld [vmem:[#allocation5 + $0x128] sm:$0xff]
    %v88 = vld [vmem:[#allocation5 + $0x140] sm:$0xff]
    %v89 = vld [vmem:[#allocation5 + $0x158] sm:$0xff]
    %v90 = vld [vmem:[#allocation5 + $0x170] sm:$0xff]
    %v91 = vld [vmem:[#allocation5 + $0x10] sm:$0xff]
    %v92 = vld [vmem:[#allocation5 + $0x28] sm:$0xff]
    %v93 = vld [vmem:[#allocation5 + $0x40] sm:$0xff]
    %v94 = vld [vmem:[#allocation5 + $0x58] sm:$0xff]
    %v95 = vld [vmem:[#allocation5 + $0x70] sm:$0xff]
    %v96 = vld [vmem:[#allocation5 + $0x88] sm:$0xff]
    %v97 = vld [vmem:[#allocation5 + $0xa0] sm:$0xff]
    %v98 = vld [vmem:[#allocation5 + $0xb8] sm:$0xff]
    %v99 = vld [vmem:[#allocation5 + $0xd0] sm:$0xff]
    %v100 = vld [vmem:[#allocation5 + $0xe8] sm:$0xff]
    %v101 = vld [vmem:[#allocation5 + $0x100] sm:$0xff]
    %v102 = vld [vmem:[#allocation5 + $0x118] sm:$0xff]
    %v103 = vld [vmem:[#allocation5 + $0x130] sm:$0xff]
    %v104 = vld [vmem:[#allocation5 + $0x148] sm:$0xff]
    %v105 = vld [vmem:[#allocation5 + $0x160] sm:$0xff]
    %v106 = vld [vmem:[#allocation5 + $0x178] sm:$0xff]
    %v107 = vld [vmem:[%s2] sm:$0x1]
    %v108 = vld [vmem:[%s2 + $0x1] sm:$0x1]
    %v109 = vld [vmem:[%s2 + $0x2] sm:$0x1]
    %v111 = vlaneseq
    %v112 = vshrl.u32 %v111, 7
    %v113 = vsub.s32 0, %v112
    %v114 = vrot.slane %v107, %v113
    %116 = vmatprep.subr.mxu0 0.0
    %117 = vmatpush1.msra.mxu0 %v74
    %118 = vmatprep.subr.mxu0 0.0
    %119 = vmatpush1.msra.mxu0 %v73
    %120 = vmatprep.subr.mxu0 0.0
    %121 = vmatpush1.msra.mxu0 %v72
    %122 = vmatprep.subr.mxu0 0.0
    %123 = vmatpush1.msra.mxu0 %v71
    %124 = vmatprep.subr.mxu0 0.0
    %125 = vmatpush1.msra.mxu0 %v70
    %126 = vmatprep.subr.mxu0 0.0
    %127 = vmatpush1.msra.mxu0 %v69
    %128 = vmatprep.subr.mxu0 0.0
    %129 = vmatpush1.msra.mxu0 %v68
    %130 = vmatprep.subr.mxu0 0.0
    %131 = vmatpush1.msra.mxu0 %v67
    %132 = vmatprep.subr.mxu0 0.0
    %133 = vmatpush1.msra.mxu0 %v66
    %134 = vmatprep.subr.mxu0 0.0
    %135 = vmatpush1.msra.mxu0 %v65
    %136 = vmatprep.subr.mxu0 0.0
    %137 = vmatpush1.msra.mxu0 %v64
    %138 = vmatprep.subr.mxu0 0.0
    %139 = vmatpush1.msra.mxu0 %v63
    %140 = vmatprep.subr.mxu0 0.0
    %141 = vmatpush1.msra.mxu0 %v62
    %142 = vmatprep.subr.mxu0 0.0
    %143 = vmatpush1.msra.mxu0 %v61
    %144 = vmatprep.subr.mxu0 0.0
    %145 = vmatpush1.msra.mxu0 %v60
    %146 = vmatprep.subr.mxu0 0.0
    %147 = vmatpush1.msra.mxu0 %v59
    %148 = vmatprep.subr.mxu0 0.0
    %149 = vmatpush2.msra.mxu0 0.0
    %150 = vmatprep.subr.mxu0 0.0
    %151 = vmatpush2.msra.mxu0 0.0
    %152 = vmatprep.subr.mxu0 0.0
    %153 = vmatpush2.msra.mxu0 0.0
    %154 = vmatprep.subr.mxu0 0.0
    %155 = vmatpush2.msra.mxu0 0.0
    %156 = vmatprep.subr.mxu0 0.0
    %157 = vmatpush2.msra.mxu0 0.0
    %158 = vmatprep.subr.mxu0 0.0
    %159 = vmatpush2.msra.mxu0 0.0
    %160 = vmatprep.subr.mxu0 0.0
    %161 = vmatpush2.msra.mxu0 0.0
    %162 = vmatprep.subr.mxu0 0.0
    %163 = vmatpush2.msra.mxu0 0.0
    %164 = vmatprep.subr.mxu0 0.0
    %165 = vmatpush2.msra.mxu0 0.0
    %166 = vmatprep.subr.mxu0 0.0
    %167 = vmatpush2.msra.mxu0 0.0
    %168 = vmatprep.subr.mxu0 0.0
    %169 = vmatpush2.msra.mxu0 0.0
    %170 = vmatprep.subr.mxu0 0.0
    %171 = vmatpush2.msra.mxu0 0.0
    %172 = vmatprep.subr.mxu0 0.0
    %173 = vmatpush2.msra.mxu0 0.0
    %174 = vmatprep.subr.mxu0 0.0
    %175 = vmatpush2.msra.mxu0 0.0
    %176 = vmatprep.subr.mxu0 0.0
    %177 = vmatpush2.msra.mxu0 0.0
    %178 = vmatprep.subr.mxu0 0.0
    %179 = vmatpush2.msra.mxu0 0.0
    %180 = vmatprep.mubr.f32.mxu0 0.0
    %181 = vmatmul.mubr.f32.gmra.mxu0 %v43
    %v182 = vpop.f32.mrf.mxu0
    %v183 = vadd.f32 %v114, %v182
    %v184 = vpop.f32.mrf.mxu0
    %185 = vmatprep.mubr.f32.mxu0 0.0
    %186 = vmatmul.mubr.f32.gmra.mxu0 %v44
    %v187 = vpop.f32.mrf.mxu0
    %v188 = vadd.f32 %v114, %v187
    %v189 = vpop.f32.mrf.mxu0
    %190 = vmatprep.mubr.f32.mxu0 0.0
    %191 = vmatmul.mubr.f32.gmra.mxu0 %v45
    %v192 = vpop.f32.mrf.mxu0
    %v193 = vadd.f32 %v114, %v192
    %v194 = vpop.f32.mrf.mxu0
    %195 = vmatprep.mubr.f32.mxu0 0.0
    %196 = vmatmul.mubr.f32.gmra.mxu0 %v46
    %v197 = vpop.f32.mrf.mxu0
    %v198 = vadd.f32 %v114, %v197
    %v199 = vpop.f32.mrf.mxu0
    %200 = vmatprep.mubr.f32.mxu0 0.0
    %201 = vmatmul.mubr.f32.gmra.mxu0 %v47
    %v202 = vpop.f32.mrf.mxu0
    %v203 = vadd.f32 %v114, %v202
    %v204 = vpop.f32.mrf.mxu0
    %205 = vmatprep.mubr.f32.mxu0 0.0
    %206 = vmatmul.mubr.f32.gmra.mxu0 %v48
    %v207 = vpop.f32.mrf.mxu0
    %v208 = vadd.f32 %v114, %v207
    %v209 = vpop.f32.mrf.mxu0
    %210 = vmatprep.mubr.f32.mxu0 0.0
    %211 = vmatmul.mubr.f32.gmra.mxu0 %v49
    %v212 = vpop.f32.mrf.mxu0
    %v213 = vadd.f32 %v114, %v212
    %v214 = vpop.f32.mrf.mxu0
    %215 = vmatprep.mubr.f32.mxu0 0.0
    %216 = vmatmul.mubr.f32.gmra.mxu0 %v50
    %v217 = vpop.f32.mrf.mxu0
    %v218 = vadd.f32 %v114, %v217
    %v219 = vpop.f32.mrf.mxu0
    %220 = vmatprep.mubr.f32.mxu0 0.0
    %221 = vmatmul.mubr.f32.gmra.mxu0 %v51
    %v222 = vpop.f32.mrf.mxu0
    %v223 = vadd.f32 %v114, %v222
    %v224 = vpop.f32.mrf.mxu0
    %225 = vmatprep.mubr.f32.mxu0 0.0
    %226 = vmatmul.mubr.f32.gmra.mxu0 %v52
    %v227 = vpop.f32.mrf.mxu0
    %v228 = vadd.f32 %v114, %v227
    %v229 = vpop.f32.mrf.mxu0
    %230 = vmatprep.mubr.f32.mxu0 0.0
    %231 = vmatmul.mubr.f32.gmra.mxu0 %v53
    %v232 = vpop.f32.mrf.mxu0
    %v233 = vadd.f32 %v114, %v232
    %v234 = vpop.f32.mrf.mxu0
    %235 = vmatprep.mubr.f32.mxu0 0.0
    %236 = vmatmul.mubr.f32.gmra.mxu0 %v54
    %v237 = vpop.f32.mrf.mxu0
    %v238 = vadd.f32 %v114, %v237
    %v239 = vpop.f32.mrf.mxu0
    %240 = vmatprep.mubr.f32.mxu0 0.0
    %241 = vmatmul.mubr.f32.gmra.mxu0 %v55
    %v242 = vpop.f32.mrf.mxu0
    %v243 = vadd.f32 %v114, %v242
    %v244 = vpop.f32.mrf.mxu0
    %245 = vmatprep.mubr.f32.mxu0 0.0
    %246 = vmatmul.mubr.f32.gmra.mxu0 %v56
    %v247 = vpop.f32.mrf.mxu0
    %v248 = vadd.f32 %v114, %v247
    %v249 = vpop.f32.mrf.mxu0
    %250 = vmatprep.mubr.f32.mxu0 0.0
    %251 = vmatmul.mubr.f32.gmra.mxu0 %v57
    %v252 = vpop.f32.mrf.mxu0
    %v253 = vadd.f32 %v114, %v252
    %v254 = vpop.f32.mrf.mxu0
    %255 = vmatprep.mubr.f32.mxu0 0.0
    %256 = vmatmul.mubr.f32.gmra.mxu0 %v58
    %v257 = vpop.f32.mrf.mxu0
    %v258 = vadd.f32 %v114, %v257
    %v259 = vpop.f32.mrf.mxu0
    %260 = vdwg.mxu0
    %v261 = vmax.f32 %v183, 0.0
    %v262 = vmax.f32 %v188, 0.0
    %v263 = vmax.f32 %v193, 0.0
    %v264 = vmax.f32 %v198, 0.0
    %v265 = vmax.f32 %v203, 0.0
    %v266 = vmax.f32 %v208, 0.0
    %v267 = vmax.f32 %v213, 0.0
    %v268 = vmax.f32 %v218, 0.0
    %v269 = vmax.f32 %v223, 0.0
    %v270 = vmax.f32 %v228, 0.0
    %v271 = vmax.f32 %v233, 0.0
    %v272 = vmax.f32 %v238, 0.0
    %v273 = vmax.f32 %v243, 0.0
    %v274 = vmax.f32 %v248, 0.0
    %v275 = vmax.f32 %v253, 0.0
    %v276 = vmax.f32 %v258, 0.0
    %v278 = vlaneseq
    %v279 = vshrl.u32 %v278, 7
    %v280 = vsub.s32 0, %v279
    %v281 = vrot.slane %v108, %v280
    %283 = vmatprep.subr.mxu0 0.0
    %284 = vmatpush1.msra.mxu0 %v90
    %285 = vmatprep.subr.mxu0 0.0
    %286 = vmatpush1.msra.mxu0 %v89
    %287 = vmatprep.subr.mxu0 0.0
    %288 = vmatpush1.msra.mxu0 %v88
    %289 = vmatprep.subr.mxu0 0.0
    %290 = vmatpush1.msra.mxu0 %v87
    %291 = vmatprep.subr.mxu0 0.0
    %292 = vmatpush1.msra.mxu0 %v86
    %293 = vmatprep.subr.mxu0 0.0
    %294 = vmatpush1.msra.mxu0 %v85
    %295 = vmatprep.subr.mxu0 0.0
    %296 = vmatpush1.msra.mxu0 %v84
    %297 = vmatprep.subr.mxu0 0.0
    %298 = vmatpush1.msra.mxu0 %v83
    %299 = vmatprep.subr.mxu0 0.0
    %300 = vmatpush1.msra.mxu0 %v82
    %301 = vmatprep.subr.mxu0 0.0
    %302 = vmatpush1.msra.mxu0 %v81
    %303 = vmatprep.subr.mxu0 0.0
    %304 = vmatpush1.msra.mxu0 %v80
    %305 = vmatprep.subr.mxu0 0.0
    %306 = vmatpush1.msra.mxu0 %v79
    %307 = vmatprep.subr.mxu0 0.0
    %308 = vmatpush1.msra.mxu0 %v78
    %309 = vmatprep.subr.mxu0 0.0
    %310 = vmatpush1.msra.mxu0 %v77
    %311 = vmatprep.subr.mxu0 0.0
    %312 = vmatpush1.msra.mxu0 %v76
    %313 = vmatprep.subr.mxu0 0.0
    %314 = vmatpush1.msra.mxu0 %v75
    %315 = vmatprep.subr.mxu0 0.0
    %316 = vmatpush2.msra.mxu0 0.0
    %317 = vmatprep.subr.mxu0 0.0
    %318 = vmatpush2.msra.mxu0 0.0
    %319 = vmatprep.subr.mxu0 0.0
    %320 = vmatpush2.msra.mxu0 0.0
    %321 = vmatprep.subr.mxu0 0.0
    %322 = vmatpush2.msra.mxu0 0.0
    %323 = vmatprep.subr.mxu0 0.0
    %324 = vmatpush2.msra.mxu0 0.0
    %325 = vmatprep.subr.mxu0 0.0
    %326 = vmatpush2.msra.mxu0 0.0
    %327 = vmatprep.subr.mxu0 0.0
    %328 = vmatpush2.msra.mxu0 0.0
    %329 = vmatprep.subr.mxu0 0.0
    %330 = vmatpush2.msra.mxu0 0.0
    %331 = vmatprep.subr.mxu0 0.0
    %332 = vmatpush2.msra.mxu0 0.0
    %333 = vmatprep.subr.mxu0 0.0
    %334 = vmatpush2.msra.mxu0 0.0
    %335 = vmatprep.subr.mxu0 0.0
    %336 = vmatpush2.msra.mxu0 0.0
    %337 = vmatprep.subr.mxu0 0.0
    %338 = vmatpush2.msra.mxu0 0.0
    %339 = vmatprep.subr.mxu0 0.0
    %340 = vmatpush2.msra.mxu0 0.0
    %341 = vmatprep.subr.mxu0 0.0
    %342 = vmatpush2.msra.mxu0 0.0
    %343 = vmatprep.subr.mxu0 0.0
    %344 = vmatpush2.msra.mxu0 0.0
    %345 = vmatprep.subr.mxu0 0.0
    %346 = vmatpush2.msra.mxu0 0.0
    %347 = vmatprep.mubr.f32.mxu0 0.0
    %348 = vmatmul.mubr.f32.gmra.mxu0 %v261
    %v349 = vpop.f32.mrf.mxu0
    %v350 = vadd.f32 %v281, %v349
    %v351 = vpop.f32.mrf.mxu0
    %352 = vmatprep.mubr.f32.mxu0 0.0
    %353 = vmatmul.mubr.f32.gmra.mxu0 %v262
    %v354 = vpop.f32.mrf.mxu0
    %v355 = vadd.f32 %v281, %v354
    %v356 = vpop.f32.mrf.mxu0
    %357 = vmatprep.mubr.f32.mxu0 0.0
    %358 = vmatmul.mubr.f32.gmra.mxu0 %v263
    %v359 = vpop.f32.mrf.mxu0
    %v360 = vadd.f32 %v281, %v359
    %v361 = vpop.f32.mrf.mxu0
    %362 = vmatprep.mubr.f32.mxu0 0.0
    %363 = vmatmul.mubr.f32.gmra.mxu0 %v264
    %v364 = vpop.f32.mrf.mxu0
    %v365 = vadd.f32 %v281, %v364
    %v366 = vpop.f32.mrf.mxu0
    %367 = vmatprep.mubr.f32.mxu0 0.0
    %368 = vmatmul.mubr.f32.gmra.mxu0 %v265
    %v369 = vpop.f32.mrf.mxu0
    %v370 = vadd.f32 %v281, %v369
    %v371 = vpop.f32.mrf.mxu0
    %372 = vmatprep.mubr.f32.mxu0 0.0
    %373 = vmatmul.mubr.f32.gmra.mxu0 %v266
    %v374 = vpop.f32.mrf.mxu0
    %v375 = vadd.f32 %v281, %v374
    %v376 = vpop.f32.mrf.mxu0
    %377 = vmatprep.mubr.f32.mxu0 0.0
    %378 = vmatmul.mubr.f32.gmra.mxu0 %v267
    %v379 = vpop.f32.mrf.mxu0
    %v380 = vadd.f32 %v281, %v379
    %v381 = vpop.f32.mrf.mxu0
    %382 = vmatprep.mubr.f32.mxu0 0.0
    %383 = vmatmul.mubr.f32.gmra.mxu0 %v268
    %v384 = vpop.f32.mrf.mxu0
    %v385 = vadd.f32 %v281, %v384
    %v386 = vpop.f32.mrf.mxu0
    %387 = vmatprep.mubr.f32.mxu0 0.0
    %388 = vmatmul.mubr.f32.gmra.mxu0 %v269
    %v389 = vpop.f32.mrf.mxu0
    %v390 = vadd.f32 %v281, %v389
    %v391 = vpop.f32.mrf.mxu0
    %392 = vmatprep.mubr.f32.mxu0 0.0
    %393 = vmatmul.mubr.f32.gmra.mxu0 %v270
    %v394 = vpop.f32.mrf.mxu0
    %v395 = vadd.f32 %v281, %v394
    %v396 = vpop.f32.mrf.mxu0
    %397 = vmatprep.mubr.f32.mxu0 0.0
    %398 = vmatmul.mubr.f32.gmra.mxu0 %v271
    %v399 = vpop.f32.mrf.mxu0
    %v400 = vadd.f32 %v281, %v399
    %v401 = vpop.f32.mrf.mxu0
    %402 = vmatprep.mubr.f32.mxu0 0.0
    %403 = vmatmul.mubr.f32.gmra.mxu0 %v272
    %v404 = vpop.f32.mrf.mxu0
    %v405 = vadd.f32 %v281, %v404
    %v406 = vpop.f32.mrf.mxu0
    %407 = vmatprep.mubr.f32.mxu0 0.0
    %408 = vmatmul.mubr.f32.gmra.mxu0 %v273
    %v409 = vpop.f32.mrf.mxu0
    %v410 = vadd.f32 %v281, %v409
    %v411 = vpop.f32.mrf.mxu0
    %412 = vmatprep.mubr.f32.mxu0 0.0
    %413 = vmatmul.mubr.f32.gmra.mxu0 %v274
    %v414 = vpop.f32.mrf.mxu0
    %v415 = vadd.f32 %v281, %v414
    %v416 = vpop.f32.mrf.mxu0
    %417 = vmatprep.mubr.f32.mxu0 0.0
    %418 = vmatmul.mubr.f32.gmra.mxu0 %v275
    %v419 = vpop.f32.mrf.mxu0
    %v420 = vadd.f32 %v281, %v419
    %v421 = vpop.f32.mrf.mxu0
    %422 = vmatprep.mubr.f32.mxu0 0.0
    %423 = vmatmul.mubr.f32.gmra.mxu0 %v276
    %v424 = vpop.f32.mrf.mxu0
    %v425 = vadd.f32 %v281, %v424
    %v426 = vpop.f32.mrf.mxu0
    %427 = vdwg.mxu0
    %v428 = vmax.f32 %v350, 0.0
    %v429 = vmax.f32 %v355, 0.0
    %v430 = vmax.f32 %v360, 0.0
    %v431 = vmax.f32 %v365, 0.0
    %v432 = vmax.f32 %v370, 0.0
    %v433 = vmax.f32 %v375, 0.0
    %v434 = vmax.f32 %v380, 0.0
    %v435 = vmax.f32 %v385, 0.0
    %v436 = vmax.f32 %v390, 0.0
    %v437 = vmax.f32 %v395, 0.0
    %v438 = vmax.f32 %v400, 0.0
    %v439 = vmax.f32 %v405, 0.0
    %v440 = vmax.f32 %v410, 0.0
    %v441 = vmax.f32 %v415, 0.0
    %v442 = vmax.f32 %v420, 0.0
    %v443 = vmax.f32 %v425, 0.0
    %v445 = vlaneseq
    %v446 = vshrl.u32 %v445, 7
    %v447 = vsub.s32 0, %v446
    %v448 = vrot.slane %v109, %v447
    %450 = vmatprep.subr.mxu0 0.0
    %451 = vmatpush1.msra.mxu0 %v106
    %452 = vmatprep.subr.mxu0 0.0
    %453 = vmatpush1.msra.mxu0 %v105
    %454 = vmatprep.subr.mxu0 0.0
    %455 = vmatpush1.msra.mxu0 %v104
    %456 = vmatprep.subr.mxu0 0.0
    %457 = vmatpush1.msra.mxu0 %v103
    %458 = vmatprep.subr.mxu0 0.0
    %459 = vmatpush1.msra.mxu0 %v102
    %460 = vmatprep.subr.mxu0 0.0
    %461 = vmatpush1.msra.mxu0 %v101
    %462 = vmatprep.subr.mxu0 0.0
    %463 = vmatpush1.msra.mxu0 %v100
    %464 = vmatprep.subr.mxu0 0.0
    %465 = vmatpush1.msra.mxu0 %v99
    %466 = vmatprep.subr.mxu0 0.0
    %467 = vmatpush1.msra.mxu0 %v98
    %468 = vmatprep.subr.mxu0 0.0
    %469 = vmatpush1.msra.mxu0 %v97
    %470 = vmatprep.subr.mxu0 0.0
    %471 = vmatpush1.msra.mxu0 %v96
    %472 = vmatprep.subr.mxu0 0.0
    %473 = vmatpush1.msra.mxu0 %v95
    %474 = vmatprep.subr.mxu0 0.0
    %475 = vmatpush1.msra.mxu0 %v94
    %476 = vmatprep.subr.mxu0 0.0
    %477 = vmatpush1.msra.mxu0 %v93
    %478 = vmatprep.subr.mxu0 0.0
    %479 = vmatpush1.msra.mxu0 %v92
    %480 = vmatprep.subr.mxu0 0.0
    %481 = vmatpush1.msra.mxu0 %v91
    %482 = vmatprep.subr.mxu0 0.0
    %483 = vmatpush2.msra.mxu0 0.0
    %484 = vmatprep.subr.mxu0 0.0
    %485 = vmatpush2.msra.mxu0 0.0
    %486 = vmatprep.subr.mxu0 0.0
    %487 = vmatpush2.msra.mxu0 0.0
    %488 = vmatprep.subr.mxu0 0.0
    %489 = vmatpush2.msra.mxu0 0.0
    %490 = vmatprep.subr.mxu0 0.0
    %491 = vmatpush2.msra.mxu0 0.0
    %492 = vmatprep.subr.mxu0 0.0
    %493 = vmatpush2.msra.mxu0 0.0
    %494 = vmatprep.subr.mxu0 0.0
    %495 = vmatpush2.msra.mxu0 0.0
    %496 = vmatprep.subr.mxu0 0.0
    %497 = vmatpush2.msra.mxu0 0.0
    %498 = vmatprep.subr.mxu0 0.0
    %499 = vmatpush2.msra.mxu0 0.0
    %500 = vmatprep.subr.mxu0 0.0
    %501 = vmatpush2.msra.mxu0 0.0
    %502 = vmatprep.subr.mxu0 0.0
    %503 = vmatpush2.msra.mxu0 0.0
    %504 = vmatprep.subr.mxu0 0.0
    %505 = vmatpush2.msra.mxu0 0.0
    %506 = vmatprep.subr.mxu0 0.0
    %507 = vmatpush2.msra.mxu0 0.0
    %508 = vmatprep.subr.mxu0 0.0
    %509 = vmatpush2.msra.mxu0 0.0
    %510 = vmatprep.subr.mxu0 0.0
    %511 = vmatpush2.msra.mxu0 0.0
    %512 = vmatprep.subr.mxu0 0.0
    %513 = vmatpush2.msra.mxu0 0.0
    %514 = vmatprep.mubr.f32.mxu0 0.0
    %515 = vmatmul.mubr.f32.gmra.mxu0 %v428
    %v516 = vpop.f32.mrf.mxu0
    %v517 = vadd.f32 %v448, %v516
    %v518 = vpop.f32.mrf.mxu0
    %519 = vmatprep.mubr.f32.mxu0 0.0
    %520 = vmatmul.mubr.f32.gmra.mxu0 %v429
    %v521 = vpop.f32.mrf.mxu0
    %v522 = vadd.f32 %v448, %v521
    %v523 = vpop.f32.mrf.mxu0
    %524 = vmatprep.mubr.f32.mxu0 0.0
    %525 = vmatmul.mubr.f32.gmra.mxu0 %v430
    %v526 = vpop.f32.mrf.mxu0
    %v527 = vadd.f32 %v448, %v526
    %v528 = vpop.f32.mrf.mxu0
    %529 = vmatprep.mubr.f32.mxu0 0.0
    %530 = vmatmul.mubr.f32.gmra.mxu0 %v431
    %v531 = vpop.f32.mrf.mxu0
    %v532 = vadd.f32 %v448, %v531
    %v533 = vpop.f32.mrf.mxu0
    %534 = vmatprep.mubr.f32.mxu0 0.0
    %535 = vmatmul.mubr.f32.gmra.mxu0 %v432
    %v536 = vpop.f32.mrf.mxu0
    %v537 = vadd.f32 %v448, %v536
    %v538 = vpop.f32.mrf.mxu0
    %539 = vmatprep.mubr.f32.mxu0 0.0
    %540 = vmatmul.mubr.f32.gmra.mxu0 %v433
    %v541 = vpop.f32.mrf.mxu0
    %v542 = vadd.f32 %v448, %v541
    %v543 = vpop.f32.mrf.mxu0
    %544 = vmatprep.mubr.f32.mxu0 0.0
    %545 = vmatmul.mubr.f32.gmra.mxu0 %v434
    %v546 = vpop.f32.mrf.mxu0
    %v547 = vadd.f32 %v448, %v546
    %v548 = vpop.f32.mrf.mxu0
    %549 = vmatprep.mubr.f32.mxu0 0.0
    %550 = vmatmul.mubr.f32.gmra.mxu0 %v435
    %v551 = vpop.f32.mrf.mxu0
    %v552 = vadd.f32 %v448, %v551
    %v553 = vpop.f32.mrf.mxu0
    %554 = vmatprep.mubr.f32.mxu0 0.0
    %555 = vmatmul.mubr.f32.gmra.mxu0 %v436
    %v556 = vpop.f32.mrf.mxu0
    %v557 = vadd.f32 %v448, %v556
    %v558 = vpop.f32.mrf.mxu0
    %559 = vmatprep.mubr.f32.mxu0 0.0
    %560 = vmatmul.mubr.f32.gmra.mxu0 %v437
    %v561 = vpop.f32.mrf.mxu0
    %v562 = vadd.f32 %v448, %v561
    %v563 = vpop.f32.mrf.mxu0
    %564 = vmatprep.mubr.f32.mxu0 0.0
    %565 = vmatmul.mubr.f32.gmra.mxu0 %v438
    %v566 = vpop.f32.mrf.mxu0
    %v567 = vadd.f32 %v448, %v566
    %v568 = vpop.f32.mrf.mxu0
    %569 = vmatprep.mubr.f32.mxu0 0.0
    %570 = vmatmul.mubr.f32.gmra.mxu0 %v439
    %v571 = vpop.f32.mrf.mxu0
    %v572 = vadd.f32 %v448, %v571
    %v573 = vpop.f32.mrf.mxu0
    %574 = vmatprep.mubr.f32.mxu0 0.0
    %575 = vmatmul.mubr.f32.gmra.mxu0 %v440
    %v576 = vpop.f32.mrf.mxu0
    %v577 = vadd.f32 %v448, %v576
    %v578 = vpop.f32.mrf.mxu0
    %579 = vmatprep.mubr.f32.mxu0 0.0
    %580 = vmatmul.mubr.f32.gmra.mxu0 %v441
    %v581 = vpop.f32.mrf.mxu0
    %v582 = vadd.f32 %v448, %v581
    %v583 = vpop.f32.mrf.mxu0
    %584 = vmatprep.mubr.f32.mxu0 0.0
    %585 = vmatmul.mubr.f32.gmra.mxu0 %v442
    %v586 = vpop.f32.mrf.mxu0
    %v587 = vadd.f32 %v448, %v586
    %v588 = vpop.f32.mrf.mxu0
    %589 = vmatprep.mubr.f32.mxu0 0.0
    %590 = vmatmul.mubr.f32.gmra.mxu0 %v443
    %v591 = vpop.f32.mrf.mxu0
    %v592 = vadd.f32 %v448, %v591
    %v593 = vpop.f32.mrf.mxu0
    %594 = vdwg.mxu0
    %v595 = vlaneseq
    %v596 = vand.u32 %v595, 127
    %vm597 = vcmp.lt.s32.totalorder %v596, 4
    %v598 = vsel %vm597, 1, 0
    %v599 = vcvt.s32.f32 %v598
    %vm600 = vcmp.eq.s32.totalorder %v596, 4
    %v601 = vsel %vm600, 1, 0
    %v602 = vcvt.s32.f32 %v601
    %v603 = vmul.f32 %v517, %v599
    %v604 = vmul.f32 %v522, %v599
    %v605 = vmul.f32 %v527, %v599
    %v606 = vmul.f32 %v532, %v599
    %v607 = vmul.f32 %v537, %v599
    %v608 = vmul.f32 %v542, %v599
    %v609 = vmul.f32 %v547, %v599
    %v610 = vmul.f32 %v552, %v599
    %v611 = vmul.f32 %v557, %v599
    %v612 = vmul.f32 %v562, %v599
    %v613 = vmul.f32 %v567, %v599
    %v614 = vmul.f32 %v572, %v599
    %v615 = vmul.f32 %v577, %v599
    %v616 = vmul.f32 %v582, %v599
    %v617 = vmul.f32 %v587, %v599
    %v618 = vmul.f32 %v592, %v599
    %619 = vadd.xlane.f32.xlu0 %v603
    %v620 = vpop.xlane.xlu0 %619
    %621 = vadd.xlane.f32.xlu0 %v604
    %v622 = vpop.xlane.xlu0 %621
    %623 = vadd.xlane.f32.xlu0 %v605
    %v624 = vpop.xlane.xlu0 %623
    %625 = vadd.xlane.f32.xlu0 %v606
    %v626 = vpop.xlane.xlu0 %625
    %627 = vadd.xlane.f32.xlu0 %v607
    %v628 = vpop.xlane.xlu0 %627
    %629 = vadd.xlane.f32.xlu0 %v608
    %v630 = vpop.xlane.xlu0 %629
    %631 = vadd.xlane.f32.xlu0 %v609
    %v632 = vpop.xlane.xlu0 %631
    %633 = vadd.xlane.f32.xlu0 %v610
    %v634 = vpop.xlane.xlu0 %633
    %635 = vadd.xlane.f32.xlu0 %v611
    %v636 = vpop.xlane.xlu0 %635
    %637 = vadd.xlane.f32.xlu0 %v612
    %v638 = vpop.xlane.xlu0 %637
    %639 = vadd.xlane.f32.xlu0 %v613
    %v640 = vpop.xlane.xlu0 %639
    %641 = vadd.xlane.f32.xlu0 %v614
    %v642 = vpop.xlane.xlu0 %641
    %643 = vadd.xlane.f32.xlu0 %v615
    %v644 = vpop.xlane.xlu0 %643
    %645 = vadd.xlane.f32.xlu0 %v616
    %v646 = vpop.xlane.xlu0 %645
    %647 = vadd.xlane.f32.xlu0 %v617
    %v648 = vpop.xlane.xlu0 %647
    %649 = vadd.xlane.f32.xlu0 %v618
    %v650 = vpop.xlane.xlu0 %649
    %v651 = vmul.f32 %v620, 0.25
    %v652 = vmul.f32 %v622, 0.25
    %v653 = vmul.f32 %v624, 0.25
    %v654 = vmul.f32 %v626, 0.25
    %v655 = vmul.f32 %v628, 0.25
    %v656 = vmul.f32 %v630, 0.25
    %v657 = vmul.f32 %v632, 0.25
    %v658 = vmul.f32 %v634, 0.25
    %v659 = vmul.f32 %v636, 0.25
    %v660 = vmul.f32 %v638, 0.25
    %v661 = vmul.f32 %v640, 0.25
    %v662 = vmul.f32 %v642, 0.25
    %v663 = vmul.f32 %v644, 0.25
    %v664 = vmul.f32 %v646, 0.25
    %v665 = vmul.f32 %v648, 0.25
    %v666 = vmul.f32 %v650, 0.25
    %v667 = vmul.f32 %v517, %v602
    %v668 = vmul.f32 %v522, %v602
    %v669 = vmul.f32 %v527, %v602
    %v670 = vmul.f32 %v532, %v602
    %v671 = vmul.f32 %v537, %v602
    %v672 = vmul.f32 %v542, %v602
    %v673 = vmul.f32 %v547, %v602
    %v674 = vmul.f32 %v552, %v602
    %v675 = vmul.f32 %v557, %v602
    %v676 = vmul.f32 %v562, %v602
    %v677 = vmul.f32 %v567, %v602
    %v678 = vmul.f32 %v572, %v602
    %v679 = vmul.f32 %v577, %v602
    %v680 = vmul.f32 %v582, %v602
    %v681 = vmul.f32 %v587, %v602
    %v682 = vmul.f32 %v592, %v602
    %683 = vadd.xlane.f32.xlu0 %v667
    %v684 = vpop.xlane.xlu0 %683
    %685 = vadd.xlane.f32.xlu0 %v668
    %v686 = vpop.xlane.xlu0 %685
    %687 = vadd.xlane.f32.xlu0 %v669
    %v688 = vpop.xlane.xlu0 %687
    %689 = vadd.xlane.f32.xlu0 %v670
    %v690 = vpop.xlane.xlu0 %689
    %691 = vadd.xlane.f32.xlu0 %v671
    %v692 = vpop.xlane.xlu0 %691
    %693 = vadd.xlane.f32.xlu0 %v672
    %v694 = vpop.xlane.xlu0 %693
    %695 = vadd.xlane.f32.xlu0 %v673
    %v696 = vpop.xlane.xlu0 %695
    %697 = vadd.xlane.f32.xlu0 %v674
    %v698 = vpop.xlane.xlu0 %697
    %699 = vadd.xlane.f32.xlu0 %v675
    %v700 = vpop.xlane.xlu0 %699
    %701 = vadd.xlane.f32.xlu0 %v676
    %v702 = vpop.xlane.xlu0 %701
    %703 = vadd.xlane.f32.xlu0 %v677
    %v704 = vpop.xlane.xlu0 %703
    %705 = vadd.xlane.f32.xlu0 %v678
    %v706 = vpop.xlane.xlu0 %705
    %707 = vadd.xlane.f32.xlu0 %v679
    %v708 = vpop.xlane.xlu0 %707
    %709 = vadd.xlane.f32.xlu0 %v680
    %v710 = vpop.xlane.xlu0 %709
    %711 = vadd.xlane.f32.xlu0 %v681
    %v712 = vpop.xlane.xlu0 %711
    %713 = vadd.xlane.f32.xlu0 %v682
    %v714 = vpop.xlane.xlu0 %713
    %v715 = vsub.f32 %v684, %v651
    %v716 = vsub.f32 %v686, %v652
    %v717 = vsub.f32 %v688, %v653
    %v718 = vsub.f32 %v690, %v654
    %v719 = vsub.f32 %v692, %v655
    %v720 = vsub.f32 %v694, %v656
    %v721 = vsub.f32 %v696, %v657
    %v722 = vsub.f32 %v698, %v658
    %v723 = vsub.f32 %v700, %v659
    %v724 = vsub.f32 %v702, %v660
    %v725 = vsub.f32 %v704, %v661
    %v726 = vsub.f32 %v706, %v662
    %v727 = vsub.f32 %v708, %v663
    %v728 = vsub.f32 %v710, %v664
    %v729 = vsub.f32 %v712, %v665
    %v730 = vsub.f32 %v714, %v666
    %v731 = vadd.f32 %v517, %v715
    %v732 = vadd.f32 %v522, %v716
    %v733 = vadd.f32 %v527, %v717
    %v734 = vadd.f32 %v532, %v718
    %v735 = vadd.f32 %v537, %v719
    %v736 = vadd.f32 %v542, %v720
    %v737 = vadd.f32 %v547, %v721
    %v738 = vadd.f32 %v552, %v722
    %v739 = vadd.f32 %v557, %v723
    %v740 = vadd.f32 %v562, %v724
    %v741 = vadd.f32 %v567, %v725
    %v742 = vadd.f32 %v572, %v726
    %v743 = vadd.f32 %v577, %v727
    %v744 = vadd.f32 %v582, %v728
    %v745 = vadd.f32 %v587, %v729
    %v746 = vadd.f32 %v592, %v730
    %747 = vst [vmem:[#allocation7] sm:$0xff] %v731
    %748 = vst [vmem:[#allocation7 + $0x8] sm:$0xff] %v732
    %749 = vst [vmem:[#allocation7 + $0x10] sm:$0xff] %v733
    %750 = vst [vmem:[#allocation7 + $0x18] sm:$0xff] %v734
    %751 = vst [vmem:[#allocation7 + $0x20] sm:$0xff] %v735
    %752 = vst [vmem:[#allocation7 + $0x28] sm:$0xff] %v736
    %753 = vst [vmem:[#allocation7 + $0x30] sm:$0xff] %v737
    %754 = vst [vmem:[#allocation7 + $0x38] sm:$0xff] %v738
    %755 = vst [vmem:[#allocation7 + $0x40] sm:$0xff] %v739
    %756 = vst [vmem:[#allocation7 + $0x48] sm:$0xff] %v740
    %757 = vst [vmem:[#allocation7 + $0x50] sm:$0xff] %v741
    %758 = vst [vmem:[#allocation7 + $0x58] sm:$0xff] %v742
    %759 = vst [vmem:[#allocation7 + $0x60] sm:$0xff] %v743
    %760 = vst [vmem:[#allocation7 + $0x68] sm:$0xff] %v744
    %761 = vst [vmem:[#allocation7 + $0x70] sm:$0xff] %v745
    %762 = vst [vmem:[#allocation7 + $0x78] sm:$0xff] %v746
    // Predicated region
    $region22: #{tpu_custom_call.1} parent=1 // pred_check
      _
    $region23: #{tpu_custom_call.1} parent=1 // pred_check_branch
      %764 = sbr.rel (0) target = $region25
    $region24: #{tpu_custom_call.1} parent=1 // pred_region
      %s766 = ssub.s32 2048, 2048
      %767 = vsyncadd [#allocation4], %s766
      %s768 = sshll.u32 [#allocation7], 4
      %s769 = int_to_ptr.vmem [resolvable:$true] %s768
      %774 = dma.vmem_to_hbm [thread:$0]  %s769, 2048, %s3, [#allocation4], 128, 128, 8
    $region25: #{tpu_custom_call.1} parent=1 // pred_fallthru
      _
    // Predicated region
    $region26: #{tpu_custom_call.1} parent=1 // pred_check
      _
    $region27: #{tpu_custom_call.1} parent=1 // pred_check_branch
      %776 = sbr.rel (0) target = $region29
    $region28: #{tpu_custom_call.1} parent=1 // pred_region
      %777 = dma.done [#allocation4], 2048
    $region29: #{tpu_custom_call.1} parent=1 // pred_fallthru
      _
    %778 = vsyncpa [#allocation3], 1
    %779 = vsyncpa [#allocation6], 1
    %780 = vsyncpa [#allocation4], 1

</llo_original>
